<compile_context>
chip_gen: v5e
topology: v5e:2x2
jax: 0.10.0
libtpu: 0.0.40
codegen_flags: <defaults>
</compile_context>

<pallas_src>
import jax
import jax.numpy as jnp
from jax.experimental import pallas as pl
from jax.experimental.pallas import tpu as pltpu


D_IN, HIDDEN, D_OUT = 28, 512, 1


def decoding_kernel(x_ref, w1_ref, b1_ref, w2_ref, b2_ref, o_ref):
    # Layer 1 (28 -> 512) on the MXU: [H, D_in] @ [D_in, TM] -> [H, TM].
    h = jnp.dot(w1_ref[...], x_ref[...], preferred_element_type=jnp.float32)
    h = jnp.maximum(h + b1_ref[...], 0.0)            # b1 [H,1] broadcasts over lanes
    # Layer 2 (512 -> 1) as a [1, H] @ [H, TM] MXU dot -> lane-dense [1, TM].
    y = jnp.dot(w2_ref[...], h.astype(w2_ref.dtype),
                preferred_element_type=jnp.float32) + b2_ref[...]
    # Sigmoid: exp on the EUP, approximate reciprocal on the EUP.
    o_ref[...] = pl.reciprocal(1.0 + jnp.exp(-y), approx=True).astype(o_ref.dtype)


def decoding_forward(x, w1, b1, w2, b2, *, tm=None):
    """Forward pass of `decoding`: sigmoid(relu(x @ w1.T + b1) @ w2.T + b2).

    Shapes (PyTorch-native layouts):
      x : [B, 28] f32
      w1: [512, 28]   (nn.Linear(28, 512).weight)
      b1: [512]
      w2: [1, 512]    (nn.Linear(512, 1).weight)
      b2: [1]
    Returns [B, 1] f32.
    """
    B, d_in = x.shape
    H = w1.shape[0]
    d_out = w2.shape[0]

    # Lane tile along the batch axis.
    if tm is None:
        n128 = pl.cdiv(B, 128)
        # >= 2 grid steps whenever B > 128 (v7x megacore gets both TCs busy),
        # capped at 2048 lanes to stay well inside every scoped-VMEM default.
        tm = min(2048, 128 * max(1, pl.cdiv(n128, 2)))
    tm = max(128, (tm // 128) * 128)

    b_pad = pl.cdiv(B, tm) * tm
    grid = (b_pad // tm,)

    # Batch-in-lanes layout; zero-pad so padded lanes stay finite.
    x_t = jnp.pad(x.astype(jnp.bfloat16).T, ((0, 0), (0, b_pad - B)))
    w1_b = w1.astype(jnp.bfloat16)                  # [H, D_in]
    b1_c = b1.reshape(H, 1).astype(jnp.float32)     # [H, 1]
    w2_b = w2.astype(jnp.bfloat16)                  # [1, H]
    b2_c = b2.reshape(d_out, 1).astype(jnp.float32)

    cost = pl.CostEstimate(
        flops=2 * b_pad * d_in * H + 2 * b_pad * H + 6 * b_pad,
        transcendentals=b_pad,                       # one exp per row
        bytes_accessed=(d_in * b_pad * 2 + H * d_in * 2 + H * 4 + H * 2
                        + 4 + d_out * b_pad * 4),
    )

    out = pl.pallas_call(
        decoding_kernel,
        out_shape=jax.ShapeDtypeStruct((d_out, b_pad), jnp.float32),
        grid=grid,
        in_specs=[
            pl.BlockSpec((d_in, tm), lambda i: (0, i)),   # x: tiled over batch lanes
            pl.BlockSpec((H, d_in), lambda i: (0, 0)),    # w1: resident
            pl.BlockSpec((H, 1), lambda i: (0, 0)),       # b1: resident
            pl.BlockSpec((d_out, H), lambda i: (0, 0)),   # w2: resident
            pl.BlockSpec((d_out, 1), lambda i: (0, 0)),   # b2: resident
        ],
        out_specs=pl.BlockSpec((d_out, tm), lambda i: (0, i)),  # lane-dense output
        compiler_params=pltpu.CompilerParams(
            dimension_semantics=("parallel",),
        ),
        cost_estimate=cost,
    )(x_t, w1_b, b1_c, w2_b, b2_c)

    return out[:, :B].T                               # [B, 1]


def init_params(key, d_in=D_IN, hidden=HIDDEN, d_out=D_OUT):
    # Deterministic init mimicking nn.Linear's uniform(-1/sqrt(fan_in), +),
    # in PyTorch-native layouts.
    k1, k2, k3, k4 = jax.random.split(key, 4)
    bound1 = 1.0 / jnp.sqrt(jnp.float32(d_in))
    bound2 = 1.0 / jnp.sqrt(jnp.float32(hidden))
    w1 = jax.random.uniform(k1, (hidden, d_in), jnp.float32, -bound1, bound1)
    b1 = jax.random.uniform(k2, (hidden,), jnp.float32, -bound1, bound1)
    w2 = jax.random.uniform(k3, (d_out, hidden), jnp.float32, -bound2, bound2)
    b2 = jax.random.uniform(k4, (d_out,), jnp.float32, -bound2, bound2)
    return w1, b1, w2, b2


def _reference(x, w1, b1, w2, b2):
    h = jnp.maximum(x @ w1.T + b1, 0.0)
    return jax.nn.sigmoid(h @ w2.T + b2)


if __name__ == "__main__":
    key = jax.random.PRNGKey(0)
    k_x, k_p, k_x2 = jax.random.split(key, 3)

    w1, b1, w2, b2 = init_params(k_p)

    # Small, module-consistent shape (single grid step, padded to 128 lanes).
    B = 8
    x = jax.random.normal(k_x, (B, D_IN), jnp.float32)
    out = jax.block_until_ready(decoding_forward(x, w1, b1, w2, b2))
    ref = _reference(x, w1, b1, w2, b2)
    assert out.shape == (B, D_OUT)
    # bf16 MXU operands (f32 accumulate) -> slightly looser tolerance vs f32 ref.
    assert jnp.allclose(out, ref, atol=1e-2, rtol=1e-2), float(
        jnp.max(jnp.abs(out - ref)))

    # Multi-tile grid + padding path (B not a multiple of 128, 3 grid steps).
    B2 = 300
    x2 = jax.random.normal(k_x2, (B2, D_IN), jnp.float32)
    out2 = jax.block_until_ready(decoding_forward(x2, w1, b1, w2, b2, tm=128))
    ref2 = _reference(x2, w1, b1, w2, b2)
    assert out2.shape == (B2, D_OUT)
    assert jnp.allclose(out2, ref2, atol=1e-2, rtol=1e-2), float(
        jnp.max(jnp.abs(out2 - ref2)))

    print("KERNEL_OK")
</pallas_src>

<mosaic_0001>
module attributes {stable_mosaic.version = 11 : i64} {
  func.func @decoding_kernel(%arg0: i32, %arg1: memref<28x128xbf16, #tpu.memory_space<vmem>>, %arg2: memref<512x28xbf16, #tpu.memory_space<vmem>>, %arg3: memref<512x1xf32, #tpu.memory_space<vmem>>, %arg4: memref<1x512xbf16, #tpu.memory_space<vmem>>, %arg5: memref<1x1xf32, #tpu.memory_space<vmem>>, %arg6: memref<1x128xf32, #tpu.memory_space<vmem>>) attributes {dimension_semantics = [#tpu.dimension_semantics<parallel>], iteration_bounds = array<i64: 1>, scalar_prefetch = 0 : i64, scratch_operands = 0 : i64, tpu.core_type = #tpu.core_type<tc>, window_params = [{transform_indices = @transform_0, window_bounds = array<i64: 28, 128>}, {pipeline_mode = #tpu.pipeline_mode<synchronous>, transform_indices = @transform_1, window_bounds = array<i64: 512, 28>}, {pipeline_mode = #tpu.pipeline_mode<synchronous>, transform_indices = @transform_2, window_bounds = array<i64: 512, 1>}, {pipeline_mode = #tpu.pipeline_mode<synchronous>, transform_indices = @transform_3, window_bounds = array<i64: 1, 512>}, {pipeline_mode = #tpu.pipeline_mode<synchronous>, transform_indices = @transform_4, window_bounds = array<i64: 1, 1>}, {transform_indices = @transform_5, window_bounds = array<i64: 1, 128>}]} {
    %c0 = arith.constant 0 : index
    %c0_0 = arith.constant 0 : index
    %0 = vector.load %arg2[%c0, %c0_0] : memref<512x28xbf16, #tpu.memory_space<vmem>>, vector<512x28xbf16>
    %c0_1 = arith.constant 0 : index
    %c0_2 = arith.constant 0 : index
    %1 = vector.load %arg1[%c0_1, %c0_2] : memref<28x128xbf16, #tpu.memory_space<vmem>>, vector<28x128xbf16>
    %cst = arith.constant dense<0.000000e+00> : vector<512x128xf32>
    %2 = tpu.matmul %0, %1, %cst {dimension_numbers = #tpu.dot_dimension_numbers<[1], [0], [0], [1], [0, 0, 1, 1], [], []>} : vector<512x28xbf16>, vector<28x128xbf16>, vector<512x128xf32> -> vector<512x128xf32>
    %c0_3 = arith.constant 0 : index
    %c0_4 = arith.constant 0 : index
    %3 = vector.load %arg3[%c0_3, %c0_4] : memref<512x1xf32, #tpu.memory_space<vmem>>, vector<512x1xf32>
    %4 = vector.broadcast %3 : vector<512x1xf32> to vector<512x128xf32>
    %5 = arith.addf %2, %4 : vector<512x128xf32>
    %cst_5 = arith.constant 0.000000e+00 : f32
    %6 = vector.broadcast %cst_5 : f32 to vector<512x128xf32>
    %7 = arith.maximumf %5, %6 : vector<512x128xf32>
    %c0_6 = arith.constant 0 : index
    %c0_7 = arith.constant 0 : index
    %8 = vector.load %arg4[%c0_6, %c0_7] : memref<1x512xbf16, #tpu.memory_space<vmem>>, vector<1x512xbf16>
    %9 = arith.truncf %7 : vector<512x128xf32> to vector<512x128xbf16>
    %cst_8 = arith.constant dense<0.000000e+00> : vector<1x128xf32>
    %10 = tpu.matmul %8, %9, %cst_8 {dimension_numbers = #tpu.dot_dimension_numbers<[1], [0], [0], [1], [0, 0, 1, 1], [], []>} : vector<1x512xbf16>, vector<512x128xbf16>, vector<1x128xf32> -> vector<1x128xf32>
    %c0_9 = arith.constant 0 : index
    %c0_10 = arith.constant 0 : index
    %11 = vector.load %arg5[%c0_9, %c0_10] : memref<1x1xf32, #tpu.memory_space<vmem>>, vector<1x1xf32>
    %12 = vector.broadcast %11 : vector<1x1xf32> to vector<1x128xf32>
    %13 = arith.addf %10, %12 : vector<1x128xf32>
    %cst_11 = arith.constant 0.000000e+00 : f32
    %14 = vector.broadcast %cst_11 : f32 to vector<1x128xf32>
    %15 = arith.subf %14, %13 : vector<1x128xf32>
    %16 = math.exp %15 : vector<1x128xf32>
    %cst_12 = arith.constant 1.000000e+00 : f32
    %17 = vector.broadcast %cst_12 : f32 to vector<1x128xf32>
    %18 = arith.addf %17, %16 : vector<1x128xf32>
    %19 = tpu.reciprocal %18 {approx = true} : vector<1x128xf32> -> vector<1x128xf32>
    %c0_13 = arith.constant 0 : index
    %c0_14 = arith.constant 0 : index
    %20 = vector.load %arg6[%c0_13, %c0_14] : memref<1x128xf32, #tpu.memory_space<vmem>>, vector<1x128xf32>
    tpu.vector_store %arg6[%c0_13, %c0_14], %19 {strides = array<i32>} : memref<1x128xf32, #tpu.memory_space<vmem>>, vector<1x128xf32>,
    return
  }
  func.func @transform_0(%arg0: i32) -> (i32, i32) {
    %c0_i32 = arith.constant 0 : i32
    %c0_i32_0 = arith.constant 0 : i32
    return %c0_i32, %arg0 : i32, i32
  }
  func.func @transform_1(%arg0: i32) -> (i32, i32) {
    %c0_i32 = arith.constant 0 : i32
    %c0_i32_0 = arith.constant 0 : i32
    %c0_i32_1 = arith.constant 0 : i32
    return %c0_i32, %c0_i32_0 : i32, i32
  }
  func.func @transform_2(%arg0: i32) -> (i32, i32) {
    %c0_i32 = arith.constant 0 : i32
    %c0_i32_0 = arith.constant 0 : i32
    %c0_i32_1 = arith.constant 0 : i32
    return %c0_i32, %c0_i32_0 : i32, i32
  }
  func.func @transform_3(%arg0: i32) -> (i32, i32) {
    %c0_i32 = arith.constant 0 : i32
    %c0_i32_0 = arith.constant 0 : i32
    %c0_i32_1 = arith.constant 0 : i32
    return %c0_i32, %c0_i32_0 : i32, i32
  }
  func.func @transform_4(%arg0: i32) -> (i32, i32) {
    %c0_i32 = arith.constant 0 : i32
    %c0_i32_0 = arith.constant 0 : i32
    %c0_i32_1 = arith.constant 0 : i32
    return %c0_i32, %c0_i32_0 : i32, i32
  }
  func.func @transform_5(%arg0: i32) -> (i32, i32) {
    %c0_i32 = arith.constant 0 : i32
    %c0_i32_0 = arith.constant 0 : i32
    return %c0_i32, %arg0 : i32, i32
  }
}

</mosaic_0001>

<llo_original>
// kernel: tpu_custom_call.1
$region0: #{tpu_custom_call.1}
  #allocation0 [shape = 'u32[]', space=smem, size = 0x4, offset = 0x4, fixed_abs, tag = 'smem constant byte address 0x4 - core index']
  #allocation1 [shape = 'u32[72,128]{1,0:T(1,128)}', space=vmem, size = 0x9000, scoped, tag = 'internal scratch']
  #allocation2 [shape = 'f32[1,1]{1,0:T(1,128)S(1)}', space=vmem, size = 0x200, scoped, tag = 'scoped memory for tpu_custom_call.1']
  %s0 = inlined_call_operand.vmem [shape: bf16[28,128], index: 0, kind: input, shape index: {}]
  %s1 = inlined_call_operand.vmem [shape: bf16[512,28], index: 1, kind: input, shape index: {}]
  %s2 = inlined_call_operand.vmem [shape: f32[512,1], index: 2, kind: input, shape index: {}]
  %s3 = inlined_call_operand.vmem [shape: bf16[1,512], index: 3, kind: input, shape index: {}]
  %s4 = inlined_call_operand.<no memory space> [shape: f32[1,1], index: 4, kind: input, shape index: {}]
  %s5 = inlined_call_operand.hbm [shape: f32[1,128], index: 5, kind: output, shape index: {}]
  %s6 = sld [smem:[#allocation0]]
  $region30: #{tpu_custom_call.1} parent=0
    _
  %s8 = ssub.s32 1, %s6
  %s9 = scalar_select 0, %s8, %s6
  %v10 = vstv %s4
  %11 = vst [vmem:[#allocation2] sm:$0x1] %v10
  $region1: #{tpu_custom_call.1} parent=0
    #allocation3 [shape = 'u8[512]{0}', space=vmem, size = 0x400, scoped, tag = 'output window, operand 0, single buffered']
    #allocation4 [shape = 's32[1]{0}', space=sflag, size = 0x4, scoped, tag = 'scoped memory for tpu_custom_call.1']
    %12 = vsyncpa [#allocation4], 0
    // Predicated region
    $region2: #{tpu_custom_call.1} parent=1 // pred_check
      _
    $region3: #{tpu_custom_call.1} parent=1 // pred_check_branch
      %14 = sbr.rel (0) target = $region5
    $region4: #{tpu_custom_call.1} parent=1 // pred_region
      _
    $region5: #{tpu_custom_call.1} parent=1 // pred_fallthru
      _
    // Predicated region
    $region6: #{tpu_custom_call.1} parent=1 // pred_check
      _
    $region7: #{tpu_custom_call.1} parent=1 // pred_check_branch
      %16 = sbr.rel (0) target = $region9
    $region8: #{tpu_custom_call.1} parent=1 // pred_region
      _
    $region9: #{tpu_custom_call.1} parent=1 // pred_fallthru
      _
    // Predicated region
    $region10: #{tpu_custom_call.1} parent=1 // pred_check
      _
    $region11: #{tpu_custom_call.1} parent=1 // pred_check_branch
      %18 = sbr.rel (0) target = $region13
    $region12: #{tpu_custom_call.1} parent=1 // pred_region
      _
    $region13: #{tpu_custom_call.1} parent=1 // pred_fallthru
      _
    // Predicated region
    $region14: #{tpu_custom_call.1} parent=1 // pred_check
      _
    $region15: #{tpu_custom_call.1} parent=1 // pred_check_branch
      %20 = sbr.rel (0) target = $region17
    $region16: #{tpu_custom_call.1} parent=1 // pred_region
      _
    $region17: #{tpu_custom_call.1} parent=1 // pred_fallthru
      _
    // Predicated region
    $region18: #{tpu_custom_call.1} parent=1 // pred_check
      _
    $region19: #{tpu_custom_call.1} parent=1 // pred_check_branch
      %22 = sbr.rel (0) target = $region21
    $region20: #{tpu_custom_call.1} parent=1 // pred_region
      _
    $region21: #{tpu_custom_call.1} parent=1 // pred_fallthru
      _
    %v24 = vld [vmem:[%s1] sm:$0xf]
    %v25 = vld [vmem:[%s1 + $0x4] sm:$0xf]
    %v26 = vld [vmem:[%s1 + $0x8] sm:$0xf]
    %v27 = vld [vmem:[%s1 + $0xc] sm:$0xf]
    %v28 = vld [vmem:[%s1 + $0x10] sm:$0xf]
    %v29 = vld [vmem:[%s1 + $0x14] sm:$0xf]
    %v30 = vld [vmem:[%s1 + $0x18] sm:$0xf]
    %v31 = vld [vmem:[%s1 + $0x1c] sm:$0xf]
    %v32 = vld [vmem:[%s1 + $0x20] sm:$0xf]
    %v33 = vld [vmem:[%s1 + $0x24] sm:$0xf]
    %v34 = vld [vmem:[%s1 + $0x28] sm:$0xf]
    %v35 = vld [vmem:[%s1 + $0x2c] sm:$0xf]
    %v36 = vld [vmem:[%s1 + $0x30] sm:$0xf]
    %v37 = vld [vmem:[%s1 + $0x34] sm:$0xf]
    %v38 = vld [vmem:[%s1 + $0x38] sm:$0xf]
    %v39 = vld [vmem:[%s1 + $0x3c] sm:$0xf]
    %v40 = vld [vmem:[%s1 + $0x40] sm:$0xf]
    %v41 = vld [vmem:[%s1 + $0x44] sm:$0xf]
    %v42 = vld [vmem:[%s1 + $0x48] sm:$0xf]
    %v43 = vld [vmem:[%s1 + $0x4c] sm:$0xf]
    %v44 = vld [vmem:[%s1 + $0x50] sm:$0xf]
    %v45 = vld [vmem:[%s1 + $0x54] sm:$0xf]
    %v46 = vld [vmem:[%s1 + $0x58] sm:$0xf]
    %v47 = vld [vmem:[%s1 + $0x5c] sm:$0xf]
    %v48 = vld [vmem:[%s1 + $0x60] sm:$0xf]
    %v49 = vld [vmem:[%s1 + $0x64] sm:$0xf]
    %v50 = vld [vmem:[%s1 + $0x68] sm:$0xf]
    %v51 = vld [vmem:[%s1 + $0x6c] sm:$0xf]
    %v52 = vld [vmem:[%s1 + $0x70] sm:$0xf]
    %v53 = vld [vmem:[%s1 + $0x74] sm:$0xf]
    %v54 = vld [vmem:[%s1 + $0x78] sm:$0xf]
    %v55 = vld [vmem:[%s1 + $0x7c] sm:$0xf]
    %v56 = vld [vmem:[%s1 + $0x80] sm:$0xf]
    %v57 = vld [vmem:[%s1 + $0x84] sm:$0xf]
    %v58 = vld [vmem:[%s1 + $0x88] sm:$0xf]
    %v59 = vld [vmem:[%s1 + $0x8c] sm:$0xf]
    %v60 = vld [vmem:[%s1 + $0x90] sm:$0xf]
    %v61 = vld [vmem:[%s1 + $0x94] sm:$0xf]
    %v62 = vld [vmem:[%s1 + $0x98] sm:$0xf]
    %v63 = vld [vmem:[%s1 + $0x9c] sm:$0xf]
    %v64 = vld [vmem:[%s1 + $0xa0] sm:$0xf]
    %v65 = vld [vmem:[%s1 + $0xa4] sm:$0xf]
    %v66 = vld [vmem:[%s1 + $0xa8] sm:$0xf]
    %v67 = vld [vmem:[%s1 + $0xac] sm:$0xf]
    %v68 = vld [vmem:[%s1 + $0xb0] sm:$0xf]
    %v69 = vld [vmem:[%s1 + $0xb4] sm:$0xf]
    %v70 = vld [vmem:[%s1 + $0xb8] sm:$0xf]
    %v71 = vld [vmem:[%s1 + $0xbc] sm:$0xf]
    %v72 = vld [vmem:[%s1 + $0xc0] sm:$0xf]
    %v73 = vld [vmem:[%s1 + $0xc4] sm:$0xf]
    %v74 = vld [vmem:[%s1 + $0xc8] sm:$0xf]
    %v75 = vld [vmem:[%s1 + $0xcc] sm:$0xf]
    %v76 = vld [vmem:[%s1 + $0xd0] sm:$0xf]
    %v77 = vld [vmem:[%s1 + $0xd4] sm:$0xf]
    %v78 = vld [vmem:[%s1 + $0xd8] sm:$0xf]
    %v79 = vld [vmem:[%s1 + $0xdc] sm:$0xf]
    %v80 = vld [vmem:[%s1 + $0xe0] sm:$0xf]
    %v81 = vld [vmem:[%s1 + $0xe4] sm:$0xf]
    %v82 = vld [vmem:[%s1 + $0xe8] sm:$0xf]
    %v83 = vld [vmem:[%s1 + $0xec] sm:$0xf]
    %v84 = vld [vmem:[%s1 + $0xf0] sm:$0xf]
    %v85 = vld [vmem:[%s1 + $0xf4] sm:$0xf]
    %v86 = vld [vmem:[%s1 + $0xf8] sm:$0xf]
    %v87 = vld [vmem:[%s1 + $0xfc] sm:$0xf]
    %v88 = vld [vmem:[%s0] sm:$0xf]
    %v89 = vld [vmem:[%s0 + $0x4] sm:$0xf]
    %v90 = vld [vmem:[%s0 + $0x8] sm:$0xf]
    %v91 = vld [vmem:[%s0 + $0xc] sm:$0x3]
    %v92 = vld [vmem:[%s2] sm:$0xff]
    %v93 = vld [vmem:[%s2 + $0x8] sm:$0xff]
    %v94 = vld [vmem:[%s2 + $0x10] sm:$0xff]
    %v95 = vld [vmem:[%s2 + $0x18] sm:$0xff]
    %v96 = vld [vmem:[%s2 + $0x20] sm:$0xff]
    %v97 = vld [vmem:[%s2 + $0x28] sm:$0xff]
    %v98 = vld [vmem:[%s2 + $0x30] sm:$0xff]
    %v99 = vld [vmem:[%s2 + $0x38] sm:$0xff]
    %v100 = vld [vmem:[%s2 + $0x40] sm:$0xff]
    %v101 = vld [vmem:[%s2 + $0x48] sm:$0xff]
    %v102 = vld [vmem:[%s2 + $0x50] sm:$0xff]
    %v103 = vld [vmem:[%s2 + $0x58] sm:$0xff]
    %v104 = vld [vmem:[%s2 + $0x60] sm:$0xff]
    %v105 = vld [vmem:[%s2 + $0x68] sm:$0xff]
    %v106 = vld [vmem:[%s2 + $0x70] sm:$0xff]
    %v107 = vld [vmem:[%s2 + $0x78] sm:$0xff]
    %v108 = vld [vmem:[%s2 + $0x80] sm:$0xff]
    %v109 = vld [vmem:[%s2 + $0x88] sm:$0xff]
    %v110 = vld [vmem:[%s2 + $0x90] sm:$0xff]
    %v111 = vld [vmem:[%s2 + $0x98] sm:$0xff]
    %v112 = vld [vmem:[%s2 + $0xa0] sm:$0xff]
    %v113 = vld [vmem:[%s2 + $0xa8] sm:$0xff]
    %v114 = vld [vmem:[%s2 + $0xb0] sm:$0xff]
    %v115 = vld [vmem:[%s2 + $0xb8] sm:$0xff]
    %v116 = vld [vmem:[%s2 + $0xc0] sm:$0xff]
    %v117 = vld [vmem:[%s2 + $0xc8] sm:$0xff]
    %v118 = vld [vmem:[%s2 + $0xd0] sm:$0xff]
    %v119 = vld [vmem:[%s2 + $0xd8] sm:$0xff]
    %v120 = vld [vmem:[%s2 + $0xe0] sm:$0xff]
    %v121 = vld [vmem:[%s2 + $0xe8] sm:$0xff]
    %v122 = vld [vmem:[%s2 + $0xf0] sm:$0xff]
    %v123 = vld [vmem:[%s2 + $0xf8] sm:$0xff]
    %v124 = vld [vmem:[%s2 + $0x100] sm:$0xff]
    %v125 = vld [vmem:[%s2 + $0x108] sm:$0xff]
    %v126 = vld [vmem:[%s2 + $0x110] sm:$0xff]
    %v127 = vld [vmem:[%s2 + $0x118] sm:$0xff]
    %v128 = vld [vmem:[%s2 + $0x120] sm:$0xff]
    %v129 = vld [vmem:[%s2 + $0x128] sm:$0xff]
    %v130 = vld [vmem:[%s2 + $0x130] sm:$0xff]
    %v131 = vld [vmem:[%s2 + $0x138] sm:$0xff]
    %v132 = vld [vmem:[%s2 + $0x140] sm:$0xff]
    %v133 = vld [vmem:[%s2 + $0x148] sm:$0xff]
    %v134 = vld [vmem:[%s2 + $0x150] sm:$0xff]
    %v135 = vld [vmem:[%s2 + $0x158] sm:$0xff]
    %v136 = vld [vmem:[%s2 + $0x160] sm:$0xff]
    %v137 = vld [vmem:[%s2 + $0x168] sm:$0xff]
    %v138 = vld [vmem:[%s2 + $0x170] sm:$0xff]
    %v139 = vld [vmem:[%s2 + $0x178] sm:$0xff]
    %v140 = vld [vmem:[%s2 + $0x180] sm:$0xff]
    %v141 = vld [vmem:[%s2 + $0x188] sm:$0xff]
    %v142 = vld [vmem:[%s2 + $0x190] sm:$0xff]
    %v143 = vld [vmem:[%s2 + $0x198] sm:$0xff]
    %v144 = vld [vmem:[%s2 + $0x1a0] sm:$0xff]
    %v145 = vld [vmem:[%s2 + $0x1a8] sm:$0xff]
    %v146 = vld [vmem:[%s2 + $0x1b0] sm:$0xff]
    %v147 = vld [vmem:[%s2 + $0x1b8] sm:$0xff]
    %v148 = vld [vmem:[%s2 + $0x1c0] sm:$0xff]
    %v149 = vld [vmem:[%s2 + $0x1c8] sm:$0xff]
    %v150 = vld [vmem:[%s2 + $0x1d0] sm:$0xff]
    %v151 = vld [vmem:[%s2 + $0x1d8] sm:$0xff]
    %v152 = vld [vmem:[%s2 + $0x1e0] sm:$0xff]
    %v153 = vld [vmem:[%s2 + $0x1e8] sm:$0xff]
    %v154 = vld [vmem:[%s2 + $0x1f0] sm:$0xff]
    %v155 = vld [vmem:[%s2 + $0x1f8] sm:$0xff]
    %157 = vset.pattern.permute.xlu0 0
    %158 = vperm.xlu0 %157, %v92
    %v159 = vpop.permute.xlu0 %158
    %162 = vset.pattern.permute.xlu0 0
    %163 = vperm.xlu0 %162, %v93
    %v164 = vpop.permute.xlu0 %163
    %167 = vset.pattern.permute.xlu0 0
    %168 = vperm.xlu0 %167, %v94
    %v169 = vpop.permute.xlu0 %168
    %172 = vset.pattern.permute.xlu0 0
    %173 = vperm.xlu0 %172, %v95
    %v174 = vpop.permute.xlu0 %173
    %177 = vset.pattern.permute.xlu0 0
    %178 = vperm.xlu0 %177, %v96
    %v179 = vpop.permute.xlu0 %178
    %182 = vset.pattern.permute.xlu0 0
    %183 = vperm.xlu0 %182, %v97
    %v184 = vpop.permute.xlu0 %183
    %187 = vset.pattern.permute.xlu0 0
    %188 = vperm.xlu0 %187, %v98
    %v189 = vpop.permute.xlu0 %188
    %192 = vset.pattern.permute.xlu0 0
    %193 = vperm.xlu0 %192, %v99
    %v194 = vpop.permute.xlu0 %193
    %197 = vset.pattern.permute.xlu0 0
    %198 = vperm.xlu0 %197, %v100
    %v199 = vpop.permute.xlu0 %198
    %202 = vset.pattern.permute.xlu0 0
    %203 = vperm.xlu0 %202, %v101
    %v204 = vpop.permute.xlu0 %203
    %207 = vset.pattern.permute.xlu0 0
    %208 = vperm.xlu0 %207, %v102
    %v209 = vpop.permute.xlu0 %208
    %212 = vset.pattern.permute.xlu0 0
    %213 = vperm.xlu0 %212, %v103
    %v214 = vpop.permute.xlu0 %213
    %217 = vset.pattern.permute.xlu0 0
    %218 = vperm.xlu0 %217, %v104
    %v219 = vpop.permute.xlu0 %218
    %222 = vset.pattern.permute.xlu0 0
    %223 = vperm.xlu0 %222, %v105
    %v224 = vpop.permute.xlu0 %223
    %227 = vset.pattern.permute.xlu0 0
    %228 = vperm.xlu0 %227, %v106
    %v229 = vpop.permute.xlu0 %228
    %232 = vset.pattern.permute.xlu0 0
    %233 = vperm.xlu0 %232, %v107
    %v234 = vpop.permute.xlu0 %233
    %237 = vset.pattern.permute.xlu0 0
    %238 = vperm.xlu0 %237, %v108
    %v239 = vpop.permute.xlu0 %238
    %242 = vset.pattern.permute.xlu0 0
    %243 = vperm.xlu0 %242, %v109
    %v244 = vpop.permute.xlu0 %243
    %247 = vset.pattern.permute.xlu0 0
    %248 = vperm.xlu0 %247, %v110
    %v249 = vpop.permute.xlu0 %248
    %252 = vset.pattern.permute.xlu0 0
    %253 = vperm.xlu0 %252, %v111
    %v254 = vpop.permute.xlu0 %253
    %257 = vset.pattern.permute.xlu0 0
    %258 = vperm.xlu0 %257, %v112
    %v259 = vpop.permute.xlu0 %258
    %262 = vset.pattern.permute.xlu0 0
    %263 = vperm.xlu0 %262, %v113
    %v264 = vpop.permute.xlu0 %263
    %267 = vset.pattern.permute.xlu0 0
    %268 = vperm.xlu0 %267, %v114
    %v269 = vpop.permute.xlu0 %268
    %272 = vset.pattern.permute.xlu0 0
    %273 = vperm.xlu0 %272, %v115
    %v274 = vpop.permute.xlu0 %273
    %277 = vset.pattern.permute.xlu0 0
    %278 = vperm.xlu0 %277, %v116
    %v279 = vpop.permute.xlu0 %278
    %282 = vset.pattern.permute.xlu0 0
    %283 = vperm.xlu0 %282, %v117
    %v284 = vpop.permute.xlu0 %283
    %287 = vset.pattern.permute.xlu0 0
    %288 = vperm.xlu0 %287, %v118
    %v289 = vpop.permute.xlu0 %288
    %292 = vset.pattern.permute.xlu0 0
    %293 = vperm.xlu0 %292, %v119
    %v294 = vpop.permute.xlu0 %293
    %297 = vset.pattern.permute.xlu0 0
    %298 = vperm.xlu0 %297, %v120
    %v299 = vpop.permute.xlu0 %298
    %302 = vset.pattern.permute.xlu0 0
    %303 = vperm.xlu0 %302, %v121
    %v304 = vpop.permute.xlu0 %303
    %307 = vset.pattern.permute.xlu0 0
    %308 = vperm.xlu0 %307, %v122
    %v309 = vpop.permute.xlu0 %308
    %312 = vset.pattern.permute.xlu0 0
    %313 = vperm.xlu0 %312, %v123
    %v314 = vpop.permute.xlu0 %313
    %317 = vset.pattern.permute.xlu0 0
    %318 = vperm.xlu0 %317, %v124
    %v319 = vpop.permute.xlu0 %318
    %322 = vset.pattern.permute.xlu0 0
    %323 = vperm.xlu0 %322, %v125
    %v324 = vpop.permute.xlu0 %323
    %327 = vset.pattern.permute.xlu0 0
    %328 = vperm.xlu0 %327, %v126
    %v329 = vpop.permute.xlu0 %328
    %332 = vset.pattern.permute.xlu0 0
    %333 = vperm.xlu0 %332, %v127
    %v334 = vpop.permute.xlu0 %333
    %337 = vset.pattern.permute.xlu0 0
    %338 = vperm.xlu0 %337, %v128
    %v339 = vpop.permute.xlu0 %338
    %342 = vset.pattern.permute.xlu0 0
    %343 = vperm.xlu0 %342, %v129
    %v344 = vpop.permute.xlu0 %343
    %347 = vset.pattern.permute.xlu0 0
    %348 = vperm.xlu0 %347, %v130
    %v349 = vpop.permute.xlu0 %348
    %352 = vset.pattern.permute.xlu0 0
    %353 = vperm.xlu0 %352, %v131
    %v354 = vpop.permute.xlu0 %353
    %357 = vset.pattern.permute.xlu0 0
    %358 = vperm.xlu0 %357, %v132
    %v359 = vpop.permute.xlu0 %358
    %362 = vset.pattern.permute.xlu0 0
    %363 = vperm.xlu0 %362, %v133
    %v364 = vpop.permute.xlu0 %363
    %367 = vset.pattern.permute.xlu0 0
    %368 = vperm.xlu0 %367, %v134
    %v369 = vpop.permute.xlu0 %368
    %372 = vset.pattern.permute.xlu0 0
    %373 = vperm.xlu0 %372, %v135
    %v374 = vpop.permute.xlu0 %373
    %377 = vset.pattern.permute.xlu0 0
    %378 = vperm.xlu0 %377, %v136
    %v379 = vpop.permute.xlu0 %378
    %382 = vset.pattern.permute.xlu0 0
    %383 = vperm.xlu0 %382, %v137
    %v384 = vpop.permute.xlu0 %383
    %387 = vset.pattern.permute.xlu0 0
    %388 = vperm.xlu0 %387, %v138
    %v389 = vpop.permute.xlu0 %388
    %392 = vset.pattern.permute.xlu0 0
    %393 = vperm.xlu0 %392, %v139
    %v394 = vpop.permute.xlu0 %393
    %397 = vset.pattern.permute.xlu0 0
    %398 = vperm.xlu0 %397, %v140
    %v399 = vpop.permute.xlu0 %398
    %402 = vset.pattern.permute.xlu0 0
    %403 = vperm.xlu0 %402, %v141
    %v404 = vpop.permute.xlu0 %403
    %407 = vset.pattern.permute.xlu0 0
    %408 = vperm.xlu0 %407, %v142
    %v409 = vpop.permute.xlu0 %408
    %412 = vset.pattern.permute.xlu0 0
    %413 = vperm.xlu0 %412, %v143
    %v414 = vpop.permute.xlu0 %413
    %417 = vset.pattern.permute.xlu0 0
    %418 = vperm.xlu0 %417, %v144
    %v419 = vpop.permute.xlu0 %418
    %422 = vset.pattern.permute.xlu0 0
    %423 = vperm.xlu0 %422, %v145
    %v424 = vpop.permute.xlu0 %423
    %427 = vset.pattern.permute.xlu0 0
    %428 = vperm.xlu0 %427, %v146
    %v429 = vpop.permute.xlu0 %428
    %432 = vset.pattern.permute.xlu0 0
    %433 = vperm.xlu0 %432, %v147
    %v434 = vpop.permute.xlu0 %433
    %437 = vset.pattern.permute.xlu0 0
    %438 = vperm.xlu0 %437, %v148
    %v439 = vpop.permute.xlu0 %438
    %442 = vset.pattern.permute.xlu0 0
    %443 = vperm.xlu0 %442, %v149
    %v444 = vpop.permute.xlu0 %443
    %447 = vset.pattern.permute.xlu0 0
    %448 = vperm.xlu0 %447, %v150
    %v449 = vpop.permute.xlu0 %448
    %452 = vset.pattern.permute.xlu0 0
    %453 = vperm.xlu0 %452, %v151
    %v454 = vpop.permute.xlu0 %453
    %457 = vset.pattern.permute.xlu0 0
    %458 = vperm.xlu0 %457, %v152
    %v459 = vpop.permute.xlu0 %458
    %462 = vset.pattern.permute.xlu0 0
    %463 = vperm.xlu0 %462, %v153
    %v464 = vpop.permute.xlu0 %463
    %467 = vset.pattern.permute.xlu0 0
    %468 = vperm.xlu0 %467, %v154
    %v469 = vpop.permute.xlu0 %468
    %472 = vset.pattern.permute.xlu0 0
    %473 = vperm.xlu0 %472, %v155
    %v474 = vpop.permute.xlu0 %473
    %v540 = vunpack.c.l.b16 %v24
    %v541 = vunpack.c.l.b16 %v25
    %v542 = vunpack.c.l.b16 %v26
    %v543 = vunpack.c.l.b16 %v27
    %v544 = vunpack.c.l.b16 %v28
    %v545 = vunpack.c.l.b16 %v29
    %v546 = vunpack.c.l.b16 %v30
    %v547 = vunpack.c.l.b16 %v31
    %v548 = vunpack.c.l.b16 %v32
    %v549 = vunpack.c.l.b16 %v33
    %v550 = vunpack.c.l.b16 %v34
    %v551 = vunpack.c.l.b16 %v35
    %v552 = vunpack.c.l.b16 %v36
    %v553 = vunpack.c.l.b16 %v37
    %v554 = vunpack.c.l.b16 %v38
    %v555 = vunpack.c.l.b16 %v39
    %v556 = vunpack.c.l.b16 %v40
    %v557 = vunpack.c.l.b16 %v41
    %v558 = vunpack.c.l.b16 %v42
    %v559 = vunpack.c.l.b16 %v43
    %v560 = vunpack.c.l.b16 %v44
    %v561 = vunpack.c.l.b16 %v45
    %v562 = vunpack.c.l.b16 %v46
    %v563 = vunpack.c.l.b16 %v47
    %v564 = vunpack.c.l.b16 %v48
    %v565 = vunpack.c.l.b16 %v49
    %v566 = vunpack.c.l.b16 %v50
    %v567 = vunpack.c.l.b16 %v51
    %v568 = vunpack.c.l.b16 %v52
    %v569 = vunpack.c.l.b16 %v53
    %v570 = vunpack.c.l.b16 %v54
    %v571 = vunpack.c.l.b16 %v55
    %v572 = vunpack.c.l.b16 %v56
    %v573 = vunpack.c.l.b16 %v57
    %v574 = vunpack.c.l.b16 %v58
    %v575 = vunpack.c.l.b16 %v59
    %v576 = vunpack.c.l.b16 %v60
    %v577 = vunpack.c.l.b16 %v61
    %v578 = vunpack.c.l.b16 %v62
    %v579 = vunpack.c.l.b16 %v63
    %v580 = vunpack.c.l.b16 %v64
    %v581 = vunpack.c.l.b16 %v65
    %v582 = vunpack.c.l.b16 %v66
    %v583 = vunpack.c.l.b16 %v67
    %v584 = vunpack.c.l.b16 %v68
    %v585 = vunpack.c.l.b16 %v69
    %v586 = vunpack.c.l.b16 %v70
    %v587 = vunpack.c.l.b16 %v71
    %v588 = vunpack.c.l.b16 %v72
    %v589 = vunpack.c.l.b16 %v73
    %v590 = vunpack.c.l.b16 %v74
    %v591 = vunpack.c.l.b16 %v75
    %v592 = vunpack.c.l.b16 %v76
    %v593 = vunpack.c.l.b16 %v77
    %v594 = vunpack.c.l.b16 %v78
    %v595 = vunpack.c.l.b16 %v79
    %v596 = vunpack.c.l.b16 %v80
    %v597 = vunpack.c.l.b16 %v81
    %v598 = vunpack.c.l.b16 %v82
    %v599 = vunpack.c.l.b16 %v83
    %v600 = vunpack.c.l.b16 %v84
    %v601 = vunpack.c.l.b16 %v85
    %v602 = vunpack.c.l.b16 %v86
    %v603 = vunpack.c.l.b16 %v87
    %v604 = vpack.c.b16 %v541, %v540
    %v605 = vpack.c.b16 %v543, %v542
    %v606 = vpack.c.b16 %v545, %v544
    %v607 = vpack.c.b16 %v547, %v546
    %v608 = vpack.c.b16 %v549, %v548
    %v609 = vpack.c.b16 %v551, %v550
    %v610 = vpack.c.b16 %v553, %v552
    %v611 = vpack.c.b16 %v555, %v554
    %v612 = vpack.c.b16 %v557, %v556
    %v613 = vpack.c.b16 %v559, %v558
    %v614 = vpack.c.b16 %v561, %v560
    %v615 = vpack.c.b16 %v563, %v562
    %v616 = vpack.c.b16 %v565, %v564
    %v617 = vpack.c.b16 %v567, %v566
    %v618 = vpack.c.b16 %v569, %v568
    %v619 = vpack.c.b16 %v571, %v570
    %v620 = vpack.c.b16 %v573, %v572
    %v621 = vpack.c.b16 %v575, %v574
    %v622 = vpack.c.b16 %v577, %v576
    %v623 = vpack.c.b16 %v579, %v578
    %v624 = vpack.c.b16 %v581, %v580
    %v625 = vpack.c.b16 %v583, %v582
    %v626 = vpack.c.b16 %v585, %v584
    %v627 = vpack.c.b16 %v587, %v586
    %v628 = vpack.c.b16 %v589, %v588
    %v629 = vpack.c.b16 %v591, %v590
    %v630 = vpack.c.b16 %v593, %v592
    %v631 = vpack.c.b16 %v595, %v594
    %v632 = vpack.c.b16 %v597, %v596
    %v633 = vpack.c.b16 %v599, %v598
    %v634 = vpack.c.b16 %v601, %v600
    %v635 = vpack.c.b16 %v603, %v602
    %v640 = vunpack.c.l.b16 %v88
    %v641 = vunpack.c.l.b16 %v89
    %v642 = vunpack.c.l.b16 %v90
    %v643 = vunpack.c.l.b16 %v91
    %v644 = vpack.c.b16 %v641, %v640
    %v645 = vpack.c.b16 %v643, %v642
    %vm647 = vcmask 228352
    %v649 = vsel %vm647, %v604, 0
    %v652 = vsel %vm647, %v605, 0
    %v655 = vsel %vm647, %v606, 0
    %v658 = vsel %vm647, %v607, 0
    %v661 = vsel %vm647, %v608, 0
    %v664 = vsel %vm647, %v609, 0
    %v667 = vsel %vm647, %v610, 0
    %v670 = vsel %vm647, %v611, 0
    %v673 = vsel %vm647, %v612, 0
    %v676 = vsel %vm647, %v613, 0
    %v679 = vsel %vm647, %v614, 0
    %v682 = vsel %vm647, %v615, 0
    %v685 = vsel %vm647, %v616, 0
    %v688 = vsel %vm647, %v617, 0
    %v691 = vsel %vm647, %v618, 0
    %v694 = vsel %vm647, %v619, 0
    %v697 = vsel %vm647, %v620, 0
    %v700 = vsel %vm647, %v621, 0
    %v703 = vsel %vm647, %v622, 0
    %v706 = vsel %vm647, %v623, 0
    %v709 = vsel %vm647, %v624, 0
    %v712 = vsel %vm647, %v625, 0
    %v715 = vsel %vm647, %v626, 0
    %v718 = vsel %vm647, %v627, 0
    %v721 = vsel %vm647, %v628, 0
    %v724 = vsel %vm647, %v629, 0
    %v727 = vsel %vm647, %v630, 0
    %v730 = vsel %vm647, %v631, 0
    %v733 = vsel %vm647, %v632, 0
    %v736 = vsel %vm647, %v633, 0
    %v739 = vsel %vm647, %v634, 0
    %v742 = vsel %vm647, %v635, 0
    %vm744 = vcmask 1045504
    %v746 = vsel %vm744, %v645, 0
    %748 = vmatpush.bf16.msra.mxu0 0
    %749 = vmatpush.bf16.msra.mxu0 0
    %750 = vmatpush.bf16.msra.mxu0 0
    %751 = vmatpush.bf16.msra.mxu0 0
    %752 = vmatpush.bf16.msra.mxu0 0
    %753 = vmatpush.bf16.msra.mxu0 0
    %754 = vmatpush.bf16.msra.mxu0 %v746
    %755 = vmatpush.bf16.msra.mxu0 %v644
    %756 = vmatmul.bf16.gmra.mxu0 %v649
    %v757 = vpop.f32.mrf.mxu0
    %v758 = vadd.f32 %v159, %v757
    %v759 = vpop.f32.mrf.mxu0
    %v760 = vadd.f32 %v164, %v759
    %761 = vmatmul.bf16.gmra.mxu0 %v652
    %v762 = vpop.f32.mrf.mxu0
    %v763 = vadd.f32 %v169, %v762
    %v764 = vpop.f32.mrf.mxu0
    %v765 = vadd.f32 %v174, %v764
    %766 = vmatmul.bf16.gmra.mxu0 %v655
    %v767 = vpop.f32.mrf.mxu0
    %v768 = vadd.f32 %v179, %v767
    %v769 = vpop.f32.mrf.mxu0
    %v770 = vadd.f32 %v184, %v769
    %771 = vmatmul.bf16.gmra.mxu0 %v658
    %v772 = vpop.f32.mrf.mxu0
    %v773 = vadd.f32 %v189, %v772
    %v774 = vpop.f32.mrf.mxu0
    %v775 = vadd.f32 %v194, %v774
    %776 = vmatmul.bf16.gmra.mxu0 %v661
    %v777 = vpop.f32.mrf.mxu0
    %v778 = vadd.f32 %v199, %v777
    %v779 = vpop.f32.mrf.mxu0
    %v780 = vadd.f32 %v204, %v779
    %781 = vmatmul.bf16.gmra.mxu0 %v664
    %v782 = vpop.f32.mrf.mxu0
    %v783 = vadd.f32 %v209, %v782
    %v784 = vpop.f32.mrf.mxu0
    %v785 = vadd.f32 %v214, %v784
    %786 = vmatmul.bf16.gmra.mxu0 %v667
    %v787 = vpop.f32.mrf.mxu0
    %v788 = vadd.f32 %v219, %v787
    %v789 = vpop.f32.mrf.mxu0
    %v790 = vadd.f32 %v224, %v789
    %791 = vmatmul.bf16.gmra.mxu0 %v670
    %v792 = vpop.f32.mrf.mxu0
    %v793 = vadd.f32 %v229, %v792
    %v794 = vpop.f32.mrf.mxu0
    %v795 = vadd.f32 %v234, %v794
    %796 = vmatmul.bf16.gmra.mxu0 %v673
    %v797 = vpop.f32.mrf.mxu0
    %v798 = vadd.f32 %v239, %v797
    %v799 = vpop.f32.mrf.mxu0
    %v800 = vadd.f32 %v244, %v799
    %801 = vmatmul.bf16.gmra.mxu0 %v676
    %v802 = vpop.f32.mrf.mxu0
    %v803 = vadd.f32 %v249, %v802
    %v804 = vpop.f32.mrf.mxu0
    %v805 = vadd.f32 %v254, %v804
    %806 = vmatmul.bf16.gmra.mxu0 %v679
    %v807 = vpop.f32.mrf.mxu0
    %v808 = vadd.f32 %v259, %v807
    %v809 = vpop.f32.mrf.mxu0
    %v810 = vadd.f32 %v264, %v809
    %811 = vmatmul.bf16.gmra.mxu0 %v682
    %v812 = vpop.f32.mrf.mxu0
    %v813 = vadd.f32 %v269, %v812
    %v814 = vpop.f32.mrf.mxu0
    %v815 = vadd.f32 %v274, %v814
    %816 = vmatmul.bf16.gmra.mxu0 %v685
    %v817 = vpop.f32.mrf.mxu0
    %v818 = vadd.f32 %v279, %v817
    %v819 = vpop.f32.mrf.mxu0
    %v820 = vadd.f32 %v284, %v819
    %821 = vmatmul.bf16.gmra.mxu0 %v688
    %v822 = vpop.f32.mrf.mxu0
    %v823 = vadd.f32 %v289, %v822
    %v824 = vpop.f32.mrf.mxu0
    %v825 = vadd.f32 %v294, %v824
    %826 = vmatmul.bf16.gmra.mxu0 %v691
    %v827 = vpop.f32.mrf.mxu0
    %v828 = vadd.f32 %v299, %v827
    %v829 = vpop.f32.mrf.mxu0
    %v830 = vadd.f32 %v304, %v829
    %831 = vmatmul.bf16.gmra.mxu0 %v694
    %v832 = vpop.f32.mrf.mxu0
    %v833 = vadd.f32 %v309, %v832
    %v834 = vpop.f32.mrf.mxu0
    %v835 = vadd.f32 %v314, %v834
    %836 = vmatmul.bf16.gmra.mxu0 %v697
    %v837 = vpop.f32.mrf.mxu0
    %v838 = vadd.f32 %v319, %v837
    %v839 = vpop.f32.mrf.mxu0
    %v840 = vadd.f32 %v324, %v839
    %841 = vmatmul.bf16.gmra.mxu0 %v700
    %v842 = vpop.f32.mrf.mxu0
    %v843 = vadd.f32 %v329, %v842
    %v844 = vpop.f32.mrf.mxu0
    %v845 = vadd.f32 %v334, %v844
    %846 = vmatmul.bf16.gmra.mxu0 %v703
    %v847 = vpop.f32.mrf.mxu0
    %v848 = vadd.f32 %v339, %v847
    %v849 = vpop.f32.mrf.mxu0
    %v850 = vadd.f32 %v344, %v849
    %851 = vmatmul.bf16.gmra.mxu0 %v706
    %v852 = vpop.f32.mrf.mxu0
    %v853 = vadd.f32 %v349, %v852
    %v854 = vpop.f32.mrf.mxu0
    %v855 = vadd.f32 %v354, %v854
    %856 = vmatmul.bf16.gmra.mxu0 %v709
    %v857 = vpop.f32.mrf.mxu0
    %v858 = vadd.f32 %v359, %v857
    %v859 = vpop.f32.mrf.mxu0
    %v860 = vadd.f32 %v364, %v859
    %861 = vmatmul.bf16.gmra.mxu0 %v712
    %v862 = vpop.f32.mrf.mxu0
    %v863 = vadd.f32 %v369, %v862
    %v864 = vpop.f32.mrf.mxu0
    %v865 = vadd.f32 %v374, %v864
    %866 = vmatmul.bf16.gmra.mxu0 %v715
    %v867 = vpop.f32.mrf.mxu0
    %v868 = vadd.f32 %v379, %v867
    %v869 = vpop.f32.mrf.mxu0
    %v870 = vadd.f32 %v384, %v869
    %871 = vmatmul.bf16.gmra.mxu0 %v718
    %v872 = vpop.f32.mrf.mxu0
    %v873 = vadd.f32 %v389, %v872
    %v874 = vpop.f32.mrf.mxu0
    %v875 = vadd.f32 %v394, %v874
    %876 = vmatmul.bf16.gmra.mxu0 %v721
    %v877 = vpop.f32.mrf.mxu0
    %v878 = vadd.f32 %v399, %v877
    %v879 = vpop.f32.mrf.mxu0
    %v880 = vadd.f32 %v404, %v879
    %881 = vmatmul.bf16.gmra.mxu0 %v724
    %v882 = vpop.f32.mrf.mxu0
    %v883 = vadd.f32 %v409, %v882
    %v884 = vpop.f32.mrf.mxu0
    %v885 = vadd.f32 %v414, %v884
    %886 = vmatmul.bf16.gmra.mxu0 %v727
    %v887 = vpop.f32.mrf.mxu0
    %v888 = vadd.f32 %v419, %v887
    %v889 = vpop.f32.mrf.mxu0
    %v890 = vadd.f32 %v424, %v889
    %891 = vmatmul.bf16.gmra.mxu0 %v730
    %v892 = vpop.f32.mrf.mxu0
    %v893 = vadd.f32 %v429, %v892
    %v894 = vpop.f32.mrf.mxu0
    %v895 = vadd.f32 %v434, %v894
    %896 = vmatmul.bf16.gmra.mxu0 %v733
    %v897 = vpop.f32.mrf.mxu0
    %v898 = vadd.f32 %v439, %v897
    %v899 = vpop.f32.mrf.mxu0
    %v900 = vadd.f32 %v444, %v899
    %901 = vmatmul.bf16.gmra.mxu0 %v736
    %v902 = vpop.f32.mrf.mxu0
    %v903 = vadd.f32 %v449, %v902
    %v904 = vpop.f32.mrf.mxu0
    %v905 = vadd.f32 %v454, %v904
    %906 = vmatmul.bf16.gmra.mxu0 %v739
    %v907 = vpop.f32.mrf.mxu0
    %v908 = vadd.f32 %v459, %v907
    %v909 = vpop.f32.mrf.mxu0
    %v910 = vadd.f32 %v464, %v909
    %911 = vmatmul.bf16.gmra.mxu0 %v742
    %v912 = vpop.f32.mrf.mxu0
    %v913 = vadd.f32 %v469, %v912
    %v914 = vpop.f32.mrf.mxu0
    %v915 = vadd.f32 %v474, %v914
    %916 = vdwg.mxu0
    %v917 = vmax.f32 %v758, 0.0
    %v918 = vmax.f32 %v760, 0.0
    %v919 = vmax.f32 %v763, 0.0
    %v920 = vmax.f32 %v765, 0.0
    %v921 = vmax.f32 %v768, 0.0
    %v922 = vmax.f32 %v770, 0.0
    %v923 = vmax.f32 %v773, 0.0
    %v924 = vmax.f32 %v775, 0.0
    %v925 = vmax.f32 %v778, 0.0
    %v926 = vmax.f32 %v780, 0.0
    %v927 = vmax.f32 %v783, 0.0
    %v928 = vmax.f32 %v785, 0.0
    %v929 = vmax.f32 %v788, 0.0
    %v930 = vmax.f32 %v790, 0.0
    %v931 = vmax.f32 %v793, 0.0
    %v932 = vmax.f32 %v795, 0.0
    %v933 = vmax.f32 %v798, 0.0
    %v934 = vmax.f32 %v800, 0.0
    %v935 = vmax.f32 %v803, 0.0
    %v936 = vmax.f32 %v805, 0.0
    %v937 = vmax.f32 %v808, 0.0
    %v938 = vmax.f32 %v810, 0.0
    %v939 = vmax.f32 %v813, 0.0
    %v940 = vmax.f32 %v815, 0.0
    %v941 = vmax.f32 %v818, 0.0
    %v942 = vmax.f32 %v820, 0.0
    %v943 = vmax.f32 %v823, 0.0
    %v944 = vmax.f32 %v825, 0.0
    %v945 = vmax.f32 %v828, 0.0
    %v946 = vmax.f32 %v830, 0.0
    %v947 = vmax.f32 %v833, 0.0
    %v948 = vmax.f32 %v835, 0.0
    %v949 = vmax.f32 %v838, 0.0
    %v950 = vmax.f32 %v840, 0.0
    %v951 = vmax.f32 %v843, 0.0
    %v952 = vmax.f32 %v845, 0.0
    %v953 = vmax.f32 %v848, 0.0
    %v954 = vmax.f32 %v850, 0.0
    %v955 = vmax.f32 %v853, 0.0
    %v956 = vmax.f32 %v855, 0.0
    %v957 = vmax.f32 %v858, 0.0
    %v958 = vmax.f32 %v860, 0.0
    %v959 = vmax.f32 %v863, 0.0
    %v960 = vmax.f32 %v865, 0.0
    %v961 = vmax.f32 %v868, 0.0
    %v962 = vmax.f32 %v870, 0.0
    %v963 = vmax.f32 %v873, 0.0
    %v964 = vmax.f32 %v875, 0.0
    %v965 = vmax.f32 %v878, 0.0
    %v966 = vmax.f32 %v880, 0.0
    %v967 = vmax.f32 %v883, 0.0
    %v968 = vmax.f32 %v885, 0.0
    %v969 = vmax.f32 %v888, 0.0
    %v970 = vmax.f32 %v890, 0.0
    %v971 = vmax.f32 %v893, 0.0
    %v972 = vmax.f32 %v895, 0.0
    %v973 = vmax.f32 %v898, 0.0
    %v974 = vmax.f32 %v900, 0.0
    %v975 = vmax.f32 %v903, 0.0
    %v976 = vmax.f32 %v905, 0.0
    %v977 = vmax.f32 %v908, 0.0
    %v978 = vmax.f32 %v910, 0.0
    %v979 = vmax.f32 %v913, 0.0
    %v980 = vmax.f32 %v915, 0.0
    %v981 = vld [vmem:[%s3] sm:$0xf]
    %v982 = vpack.c.bf16 %v918, %v917
    %v983 = vpack.c.bf16 %v920, %v919
    %v984 = vpack.c.bf16 %v922, %v921
    %v985 = vpack.c.bf16 %v924, %v923
    %v986 = vpack.c.bf16 %v926, %v925
    %v987 = vpack.c.bf16 %v928, %v927
    %v988 = vpack.c.bf16 %v930, %v929
    %v989 = vpack.c.bf16 %v932, %v931
    %v990 = vpack.c.bf16 %v934, %v933
    %v991 = vpack.c.bf16 %v936, %v935
    %v992 = vpack.c.bf16 %v938, %v937
    %v993 = vpack.c.bf16 %v940, %v939
    %v994 = vpack.c.bf16 %v942, %v941
    %v995 = vpack.c.bf16 %v944, %v943
    %v996 = vpack.c.bf16 %v946, %v945
    %v997 = vpack.c.bf16 %v948, %v947
    %v998 = vpack.c.bf16 %v950, %v949
    %v999 = vpack.c.bf16 %v952, %v951
    %v1000 = vpack.c.bf16 %v954, %v953
    %v1001 = vpack.c.bf16 %v956, %v955
    %v1002 = vpack.c.bf16 %v958, %v957
    %v1003 = vpack.c.bf16 %v960, %v959
    %v1004 = vpack.c.bf16 %v962, %v961
    %v1005 = vpack.c.bf16 %v964, %v963
    %v1006 = vpack.c.bf16 %v966, %v965
    %v1007 = vpack.c.bf16 %v968, %v967
    %v1008 = vpack.c.bf16 %v970, %v969
    %v1009 = vpack.c.bf16 %v972, %v971
    %v1010 = vpack.c.bf16 %v974, %v973
    %v1011 = vpack.c.bf16 %v976, %v975
    %v1012 = vpack.c.bf16 %v978, %v977
    %v1013 = vpack.c.bf16 %v980, %v979
    %v1014 = vld [vmem:[#allocation2] sm:$0x1]
    %1016 = vset.pattern.permute.xlu0 0
    %1017 = vperm.xlu0 %1016, %v1014
    %v1018 = vpop.permute.xlu0 %1017
    %v1020 = vperm.slane %v1018, 0
    %1022 = vst [vmem:[#allocation1] ss:$9 sm:$0xff] %v981
    %v1023 = vld [vmem:[#allocation1] sm:$0xff]
    %v1024 = vld [vmem:[#allocation1 + $0x9] sm:$0xff]
    %v1025 = vld [vmem:[#allocation1 + $0x12] sm:$0xff]
    %v1026 = vld [vmem:[#allocation1 + $0x1b] sm:$0xff]
    %1031 = vmatpush.bf16.msra.mxu0 %v989
    %1032 = vmatpush.bf16.msra.mxu0 %v988
    %1033 = vmatpush.bf16.msra.mxu0 %v987
    %1034 = vmatpush.bf16.msra.mxu0 %v986
    %1035 = vmatpush.bf16.msra.mxu0 %v985
    %1036 = vmatpush.bf16.msra.mxu0 %v984
    %1037 = vmatpush.bf16.msra.mxu0 %v983
    %1038 = vmatpush.bf16.msra.mxu0 %v982
    %1039 = vmatmul.bf16.gmra.mxu0 %v1023
    %v1040 = vpop.f32.mrf.mxu0
    %v1041 = vadd.f32 %v1020, %v1040
    %v1042 = vpop.f32.mrf.mxu0
    %1043 = vdwg.mxu0
    %1044 = vmatpush.bf16.msra.mxu0 %v997
    %1045 = vmatpush.bf16.msra.mxu0 %v996
    %1046 = vmatpush.bf16.msra.mxu0 %v995
    %1047 = vmatpush.bf16.msra.mxu0 %v994
    %1048 = vmatpush.bf16.msra.mxu0 %v993
    %1049 = vmatpush.bf16.msra.mxu0 %v992
    %1050 = vmatpush.bf16.msra.mxu0 %v991
    %1051 = vmatpush.bf16.msra.mxu0 %v990
    %1052 = vmatmul.bf16.gmra.mxu0 %v1024
    %v1053 = vpop.f32.mrf.mxu0
    %v1054 = vadd.f32 %v1041, %v1053
    %v1055 = vpop.f32.mrf.mxu0
    %1056 = vdwg.mxu0
    %1057 = vmatpush.bf16.msra.mxu0 %v1005
    %1058 = vmatpush.bf16.msra.mxu0 %v1004
    %1059 = vmatpush.bf16.msra.mxu0 %v1003
    %1060 = vmatpush.bf16.msra.mxu0 %v1002
    %1061 = vmatpush.bf16.msra.mxu0 %v1001
    %1062 = vmatpush.bf16.msra.mxu0 %v1000
    %1063 = vmatpush.bf16.msra.mxu0 %v999
    %1064 = vmatpush.bf16.msra.mxu0 %v998
    %1065 = vmatmul.bf16.gmra.mxu0 %v1025
    %v1066 = vpop.f32.mrf.mxu0
    %v1067 = vadd.f32 %v1054, %v1066
    %v1068 = vpop.f32.mrf.mxu0
    %1069 = vdwg.mxu0
    %1070 = vmatpush.bf16.msra.mxu0 %v1013
    %1071 = vmatpush.bf16.msra.mxu0 %v1012
    %1072 = vmatpush.bf16.msra.mxu0 %v1011
    %1073 = vmatpush.bf16.msra.mxu0 %v1010
    %1074 = vmatpush.bf16.msra.mxu0 %v1009
    %1075 = vmatpush.bf16.msra.mxu0 %v1008
    %1076 = vmatpush.bf16.msra.mxu0 %v1007
    %1077 = vmatpush.bf16.msra.mxu0 %v1006
    %1078 = vmatmul.bf16.gmra.mxu0 %v1026
    %v1079 = vpop.f32.mrf.mxu0
    %v1080 = vadd.f32 %v1067, %v1079
    %v1081 = vpop.f32.mrf.mxu0
    %1082 = vdwg.mxu0
    %v1083 = vsub.f32 0.0, %v1080
    %v1084 = vmul.f32 %v1083, 1.442695
    %v1085 = vpow.pop %v1084
    %v1086 = vadd.f32 %v1085, 1.0
    %v1087 = vrcp.pop %v1086
    %1088 = vst [vmem:[#allocation3] sm:$0x1] %v1087
    // Predicated region
    $region22: #{tpu_custom_call.1} parent=1 // pred_check
      _
    $region23: #{tpu_custom_call.1} parent=1 // pred_check_branch
      %1090 = sbr.rel (0) target = $region25
    $region24: #{tpu_custom_call.1} parent=1 // pred_region
      %1092 = vsyncadd [#allocation4], 0
      %s1094 = sshll.u32 [#allocation3], 4
      %s1095 = int_to_ptr.vmem [resolvable:$true] %s1094
      %s1096 = sshll.u32 %s5, 4
      %s1097 = int_to_ptr.hbm [resolvable:$true] %s1096
      %1099 = dma.vmem_to_hbm [thread:$0]  %s1095, 16, %s1097, [#allocation4]
    $region25: #{tpu_custom_call.1} parent=1 // pred_fallthru
      _
    // Predicated region
    $region26: #{tpu_custom_call.1} parent=1 // pred_check
      _
    $region27: #{tpu_custom_call.1} parent=1 // pred_check_branch
      %1101 = sbr.rel (0) target = $region29
    $region28: #{tpu_custom_call.1} parent=1 // pred_region
      %1103 = dma.done [#allocation4], 16
    $region29: #{tpu_custom_call.1} parent=1 // pred_fallthru
      _
    %1104 = vsyncpa [#allocation4], 1

</llo_original>
